<compile_context>
chip_gen: v7x
topology: tpu7x:2x2x1
jax: 0.10.0
libtpu: 0.0.40
codegen_flags: <defaults>
</compile_context>

<pallas_src>
import math

import jax
import jax.numpy as jnp
from jax import lax
from jax.experimental import pallas as pl
from jax.experimental.pallas import tpu as pltpu

LANE = 128


def _round_up(x, m):
    return ((x + m - 1) // m) * m


# ----------------------------- Pallas kernel -------------------------------

def _critic_kernel(s_ref, a_ref, g_ref,
                   w0s_ref, w0a_ref, w0g_ref, b0_ref,
                   w1_ref, b1_ref,
                   w2_ref, b2_ref,
                   w3t_ref, b3_ref,
                   out_ref):
    # layer 0: split-W0 sum replaces concat([s, a/max_action, g]) @ W0
    # (1/max_action already folded into w0a at prep time).
    h = (jnp.dot(s_ref[...], w0s_ref[...], preferred_element_type=jnp.float32)
         + jnp.dot(a_ref[...], w0a_ref[...], preferred_element_type=jnp.float32)
         + jnp.dot(g_ref[...], w0g_ref[...], preferred_element_type=jnp.float32)
         + b0_ref[...])
    h = jnp.maximum(h, 0.0)

    # layer 1 + relu
    h = jnp.dot(h, w1_ref[...], preferred_element_type=jnp.float32) + b1_ref[...]
    h = jnp.maximum(h, 0.0)

    # layer 2 + relu
    h = jnp.dot(h, w2_ref[...], preferred_element_type=jnp.float32) + b2_ref[...]
    h = jnp.maximum(h, 0.0)

    # layer 3: lane-dense output (1, TILE_B) = w3_row (1,H) contracted with
    # h (TILE_B,H) over H -> no [B,1] masked stores, no N=1 MXU result column.
    q = lax.dot_general(w3t_ref[...], h, (((1,), (1,)), ((), ())),
                        preferred_element_type=jnp.float32)
    out_ref[...] = (q + b3_ref[0]).astype(out_ref.dtype)


# ----------------------- parameter prep (done once) -------------------------

def prepare_params(params, max_action, dim_state, dim_action, dim_goal):
    """Split W0, fold 1/max_action into its action rows, pad hidden to 128."""
    w0, b0, w1, b1, w2, b2, w3, b3 = params
    h = w0.shape[1]
    h_pad = _round_up(h, LANE)
    pc = h_pad - h

    w0s = w0[:dim_state]
    w0a = w0[dim_state:dim_state + dim_action] / max_action   # fold scale
    w0g = w0[dim_state + dim_action:]

    pad_cols = lambda w: jnp.pad(w, ((0, 0), (0, pc)))
    w0s, w0a, w0g = pad_cols(w0s), pad_cols(w0a), pad_cols(w0g)
    b0p = pad_cols(b0.reshape(1, h))
    w1p = jnp.pad(w1, ((0, pc), (0, pc)))
    b1p = pad_cols(b1.reshape(1, h))
    w2p = jnp.pad(w2, ((0, pc), (0, pc)))
    b2p = pad_cols(b2.reshape(1, h))
    w3t = pad_cols(w3.reshape(1, h))            # (H,1) -> row (1, H_pad)
    b3s = b3.reshape(1).astype(jnp.float32)     # scalar via SMEM
    return (w0s, w0a, w0g, b0p, w1p, b1p, w2p, b2p, w3t, b3s)


# ------------------------------- forward -----------------------------------

def critic_monolithic_forward(s, a, g, prepared, *, tile_b=512):
    batch = s.shape[0]
    (w0s, w0a, w0g, b0, w1, b1, w2, b2, w3t, b3) = prepared
    h_pad = w1.shape[0]
    ds, da, dg = s.shape[1], a.shape[1], g.shape[1]
    dim_in = ds + da + dg

    # choose a batch tile; pad batch so the grid divides evenly.
    tb = tile_b if batch >= tile_b else _round_up(batch, 8)
    padded_b = _round_up(batch, tb)
    if padded_b != batch:
        pad = padded_b - batch
        s = jnp.pad(s, ((0, pad), (0, 0)))
        a = jnp.pad(a, ((0, pad), (0, 0)))
        g = jnp.pad(g, ((0, pad), (0, 0)))
    grid = (padded_b // tb,)

    batch_spec = lambda feat: pl.BlockSpec((tb, feat), lambda i: (i, 0))
    const_spec = lambda arr: pl.BlockSpec(arr.shape, lambda i: (0, 0))

    in_specs = [
        batch_spec(ds), batch_spec(da), batch_spec(dg),
        const_spec(w0s), const_spec(w0a), const_spec(w0g), const_spec(b0),
        const_spec(w1), const_spec(b1),
        const_spec(w2), const_spec(b2),
        const_spec(w3t),
        pl.BlockSpec(memory_space=pltpu.MemorySpace.SMEM),   # b3 scalar
    ]
    out_specs = pl.BlockSpec((1, tb), lambda i: (0, i))

    flops = 2 * padded_b * (dim_in * h_pad + 2 * h_pad * h_pad + h_pad)
    bytes_accessed = 4 * (padded_b * (dim_in + 1)
                          + (dim_in + 2 * h_pad + 1) * h_pad + 3 * h_pad + 1)
    cost = pl.CostEstimate(flops=flops, transcendentals=0,
                           bytes_accessed=bytes_accessed)

    out = pl.pallas_call(
        _critic_kernel,
        out_shape=jax.ShapeDtypeStruct((1, padded_b), jnp.float32),
        grid=grid,
        in_specs=in_specs,
        out_specs=out_specs,
        compiler_params=pltpu.CompilerParams(
            dimension_semantics=("parallel",)),
        cost_estimate=cost,
    )(s, a, g, w0s, w0a, w0g, b0, w1, b1, w2, b2, w3t, b3)

    return out[0, :batch].reshape(batch, 1)


# ------------------------ deterministic parameter init ----------------------

def xavier_uniform(key, fan_in, fan_out, dtype=jnp.float32):
    # Matches torch.nn.init.xavier_uniform_ (gain=1); stored [in, out].
    limit = math.sqrt(6.0 / (fan_in + fan_out))
    return jax.random.uniform(key, (fan_in, fan_out), dtype, -limit, limit)


def make_params(key, dim_in, dim_hidden):
    k0, k1, k2, k3 = jax.random.split(key, 4)
    w0 = xavier_uniform(k0, dim_in, dim_hidden)
    b0 = jnp.zeros((1, dim_hidden), jnp.float32)
    w1 = xavier_uniform(k1, dim_hidden, dim_hidden)
    b1 = jnp.zeros((1, dim_hidden), jnp.float32)
    w2 = xavier_uniform(k2, dim_hidden, dim_hidden)
    b2 = jnp.zeros((1, dim_hidden), jnp.float32)
    w3 = xavier_uniform(k3, dim_hidden, 1)
    b3 = jnp.zeros((1, 1), jnp.float32)
    return (w0, b0, w1, b1, w2, b2, w3, b3)


# ---------------------------------- main ------------------------------------

if __name__ == "__main__":
    batch = 8
    dim_state = 16
    dim_action = 4
    dim_goal = 8
    dim_hidden = 32
    max_action = 2.0
    dim_in = dim_state + dim_action + dim_goal

    root = jax.random.PRNGKey(0)
    k_s, k_a, k_g, k_p = jax.random.split(root, 4)

    s = jax.random.normal(k_s, (batch, dim_state), jnp.float32)
    a = jax.random.normal(k_a, (batch, dim_action), jnp.float32)
    g = jax.random.normal(k_g, (batch, dim_goal), jnp.float32)

    params = make_params(k_p, dim_in, dim_hidden)
    prepared = prepare_params(params, max_action, dim_state, dim_action, dim_goal)

    q = critic_monolithic_forward(s, a, g, prepared)
    q = jax.block_until_ready(q)

    # Reference check in plain JAX (same math as the PyTorch module).
    w0, b0, w1, b1, w2, b2, w3, b3 = params
    x = jnp.concatenate([s, a / max_action, g], axis=-1)
    h = jnp.maximum(x @ w0 + b0, 0.0)
    h = jnp.maximum(h @ w1 + b1, 0.0)
    h = jnp.maximum(h @ w2 + b2, 0.0)
    q_ref = h @ w3 + b3

    assert q.shape == (batch, 1)
    assert jnp.allclose(q, q_ref, atol=1e-4, rtol=1e-4)

    print("KERNEL_OK")
</pallas_src>

<mosaic_0001>
module attributes {stable_mosaic.version = 11 : i64} {
  func.func @_critic_kernel(%arg0: i32, %arg1: memref<8x16xf32, #tpu.memory_space<vmem>>, %arg2: memref<8x4xf32, #tpu.memory_space<vmem>>, %arg3: memref<8x8xf32, #tpu.memory_space<vmem>>, %arg4: memref<16x128xf32, #tpu.memory_space<vmem>>, %arg5: memref<4x128xf32, #tpu.memory_space<vmem>>, %arg6: memref<8x128xf32, #tpu.memory_space<vmem>>, %arg7: memref<1x128xf32, #tpu.memory_space<vmem>>, %arg8: memref<128x128xf32, #tpu.memory_space<vmem>>, %arg9: memref<1x128xf32, #tpu.memory_space<vmem>>, %arg10: memref<128x128xf32, #tpu.memory_space<vmem>>, %arg11: memref<1x128xf32, #tpu.memory_space<vmem>>, %arg12: memref<1x128xf32, #tpu.memory_space<vmem>>, %arg13: memref<1xf32, #tpu.memory_space<smem>>, %arg14: memref<1x8xf32, #tpu.memory_space<vmem>>) attributes {dimension_semantics = [#tpu.dimension_semantics<parallel>], iteration_bounds = array<i64: 1>, scalar_prefetch = 0 : i64, scratch_operands = 0 : i64, tpu.core_type = #tpu.core_type<tc>, window_params = [{transform_indices = @transform_0, window_bounds = array<i64: 8, 16>}, {transform_indices = @transform_1, window_bounds = array<i64: 8, 4>}, {transform_indices = @transform_2, window_bounds = array<i64: 8, 8>}, {pipeline_mode = #tpu.pipeline_mode<synchronous>, transform_indices = @transform_3, window_bounds = array<i64: 16, 128>}, {pipeline_mode = #tpu.pipeline_mode<synchronous>, transform_indices = @transform_4, window_bounds = array<i64: 4, 128>}, {pipeline_mode = #tpu.pipeline_mode<synchronous>, transform_indices = @transform_5, window_bounds = array<i64: 8, 128>}, {pipeline_mode = #tpu.pipeline_mode<synchronous>, transform_indices = @transform_6, window_bounds = array<i64: 1, 128>}, {pipeline_mode = #tpu.pipeline_mode<synchronous>, transform_indices = @transform_7, window_bounds = array<i64: 128, 128>}, {pipeline_mode = #tpu.pipeline_mode<synchronous>, transform_indices = @transform_8, window_bounds = array<i64: 1, 128>}, {pipeline_mode = #tpu.pipeline_mode<synchronous>, transform_indices = @transform_9, window_bounds = array<i64: 128, 128>}, {pipeline_mode = #tpu.pipeline_mode<synchronous>, transform_indices = @transform_10, window_bounds = array<i64: 1, 128>}, {pipeline_mode = #tpu.pipeline_mode<synchronous>, transform_indices = @transform_11, window_bounds = array<i64: 1, 128>}, {transform_indices = @transform_12, window_bounds = array<i64: 1>}, {transform_indices = @transform_13, window_bounds = array<i64: 1, 8>}]} {
    %c0 = arith.constant 0 : index
    %c0_0 = arith.constant 0 : index
    %0 = vector.load %arg1[%c0, %c0_0] : memref<8x16xf32, #tpu.memory_space<vmem>>, vector<8x16xf32>
    %c0_1 = arith.constant 0 : index
    %c0_2 = arith.constant 0 : index
    %1 = vector.load %arg4[%c0_1, %c0_2] : memref<16x128xf32, #tpu.memory_space<vmem>>, vector<16x128xf32>
    %cst = arith.constant dense<0.000000e+00> : vector<8x128xf32>
    %2 = tpu.matmul %0, %1, %cst {dimension_numbers = #tpu.dot_dimension_numbers<[1], [0], [0], [1], [0, 0, 1, 1], [], []>} : vector<8x16xf32>, vector<16x128xf32>, vector<8x128xf32> -> vector<8x128xf32>
    %c0_3 = arith.constant 0 : index
    %c0_4 = arith.constant 0 : index
    %3 = vector.load %arg2[%c0_3, %c0_4] : memref<8x4xf32, #tpu.memory_space<vmem>>, vector<8x4xf32>
    %c0_5 = arith.constant 0 : index
    %c0_6 = arith.constant 0 : index
    %4 = vector.load %arg5[%c0_5, %c0_6] : memref<4x128xf32, #tpu.memory_space<vmem>>, vector<4x128xf32>
    %cst_7 = arith.constant dense<0.000000e+00> : vector<8x128xf32>
    %5 = tpu.matmul %3, %4, %cst_7 {dimension_numbers = #tpu.dot_dimension_numbers<[1], [0], [0], [1], [0, 0, 1, 1], [], []>} : vector<8x4xf32>, vector<4x128xf32>, vector<8x128xf32> -> vector<8x128xf32>
    %6 = arith.addf %2, %5 : vector<8x128xf32>
    %c0_8 = arith.constant 0 : index
    %c0_9 = arith.constant 0 : index
    %7 = vector.load %arg3[%c0_8, %c0_9] : memref<8x8xf32, #tpu.memory_space<vmem>>, vector<8x8xf32>
    %c0_10 = arith.constant 0 : index
    %c0_11 = arith.constant 0 : index
    %8 = vector.load %arg6[%c0_10, %c0_11] : memref<8x128xf32, #tpu.memory_space<vmem>>, vector<8x128xf32>
    %cst_12 = arith.constant dense<0.000000e+00> : vector<8x128xf32>
    %9 = tpu.matmul %7, %8, %cst_12 {dimension_numbers = #tpu.dot_dimension_numbers<[1], [0], [0], [1], [0, 0, 1, 1], [], []>} : vector<8x8xf32>, vector<8x128xf32>, vector<8x128xf32> -> vector<8x128xf32>
    %10 = arith.addf %6, %9 : vector<8x128xf32>
    %c0_13 = arith.constant 0 : index
    %c0_14 = arith.constant 0 : index
    %11 = vector.load %arg7[%c0_13, %c0_14] : memref<1x128xf32, #tpu.memory_space<vmem>>, vector<1x128xf32>
    %12 = vector.broadcast %11 : vector<1x128xf32> to vector<8x128xf32>
    %13 = arith.addf %10, %12 : vector<8x128xf32>
    %cst_15 = arith.constant 0.000000e+00 : f32
    %14 = vector.broadcast %cst_15 : f32 to vector<8x128xf32>
    %15 = arith.maximumf %13, %14 : vector<8x128xf32>
    %c0_16 = arith.constant 0 : index
    %c0_17 = arith.constant 0 : index
    %16 = vector.load %arg8[%c0_16, %c0_17] : memref<128x128xf32, #tpu.memory_space<vmem>>, vector<128x128xf32>
    %cst_18 = arith.constant dense<0.000000e+00> : vector<8x128xf32>
    %17 = tpu.matmul %15, %16, %cst_18 {dimension_numbers = #tpu.dot_dimension_numbers<[1], [0], [0], [1], [0, 0, 1, 1], [], []>} : vector<8x128xf32>, vector<128x128xf32>, vector<8x128xf32> -> vector<8x128xf32>
    %c0_19 = arith.constant 0 : index
    %c0_20 = arith.constant 0 : index
    %18 = vector.load %arg9[%c0_19, %c0_20] : memref<1x128xf32, #tpu.memory_space<vmem>>, vector<1x128xf32>
    %19 = vector.broadcast %18 : vector<1x128xf32> to vector<8x128xf32>
    %20 = arith.addf %17, %19 : vector<8x128xf32>
    %cst_21 = arith.constant 0.000000e+00 : f32
    %21 = vector.broadcast %cst_21 : f32 to vector<8x128xf32>
    %22 = arith.maximumf %20, %21 : vector<8x128xf32>
    %c0_22 = arith.constant 0 : index
    %c0_23 = arith.constant 0 : index
    %23 = vector.load %arg10[%c0_22, %c0_23] : memref<128x128xf32, #tpu.memory_space<vmem>>, vector<128x128xf32>
    %cst_24 = arith.constant dense<0.000000e+00> : vector<8x128xf32>
    %24 = tpu.matmul %22, %23, %cst_24 {dimension_numbers = #tpu.dot_dimension_numbers<[1], [0], [0], [1], [0, 0, 1, 1], [], []>} : vector<8x128xf32>, vector<128x128xf32>, vector<8x128xf32> -> vector<8x128xf32>
    %c0_25 = arith.constant 0 : index
    %c0_26 = arith.constant 0 : index
    %25 = vector.load %arg11[%c0_25, %c0_26] : memref<1x128xf32, #tpu.memory_space<vmem>>, vector<1x128xf32>
    %26 = vector.broadcast %25 : vector<1x128xf32> to vector<8x128xf32>
    %27 = arith.addf %24, %26 : vector<8x128xf32>
    %cst_27 = arith.constant 0.000000e+00 : f32
    %28 = vector.broadcast %cst_27 : f32 to vector<8x128xf32>
    %29 = arith.maximumf %27, %28 : vector<8x128xf32>
    %c0_28 = arith.constant 0 : index
    %c0_29 = arith.constant 0 : index
    %30 = vector.load %arg12[%c0_28, %c0_29] : memref<1x128xf32, #tpu.memory_space<vmem>>, vector<1x128xf32>
    %cst_30 = arith.constant dense<0.000000e+00> : vector<1x8xf32>
    %31 = tpu.matmul %30, %29, %cst_30 {dimension_numbers = #tpu.dot_dimension_numbers<[1], [1], [0], [0], [0, 0, 1, 0], [], []>} : vector<1x128xf32>, vector<8x128xf32>, vector<1x8xf32> -> vector<1x8xf32>
    %c0_31 = arith.constant 0 : index
    %32 = memref.load %arg13[%c0_31] : memref<1xf32, #tpu.memory_space<smem>>
    %33 = vector.broadcast %32 : f32 to vector<1x8xf32>
    %34 = arith.addf %31, %33 : vector<1x8xf32>
    %c0_32 = arith.constant 0 : index
    %c0_33 = arith.constant 0 : index
    %35 = vector.load %arg14[%c0_32, %c0_33] : memref<1x8xf32, #tpu.memory_space<vmem>>, vector<1x8xf32>
    tpu.vector_store %arg14[%c0_32, %c0_33], %34 {strides = array<i32>} : memref<1x8xf32, #tpu.memory_space<vmem>>, vector<1x8xf32>,
    return
  }
  func.func @transform_0(%arg0: i32) -> (i32, i32) {
    %c0_i32 = arith.constant 0 : i32
    %c0_i32_0 = arith.constant 0 : i32
    return %arg0, %c0_i32 : i32, i32
  }
  func.func @transform_1(%arg0: i32) -> (i32, i32) {
    %c0_i32 = arith.constant 0 : i32
    %c0_i32_0 = arith.constant 0 : i32
    return %arg0, %c0_i32 : i32, i32
  }
  func.func @transform_2(%arg0: i32) -> (i32, i32) {
    %c0_i32 = arith.constant 0 : i32
    %c0_i32_0 = arith.constant 0 : i32
    return %arg0, %c0_i32 : i32, i32
  }
  func.func @transform_3(%arg0: i32) -> (i32, i32) {
    %c0_i32 = arith.constant 0 : i32
    %c0_i32_0 = arith.constant 0 : i32
    %c0_i32_1 = arith.constant 0 : i32
    return %c0_i32, %c0_i32_0 : i32, i32
  }
  func.func @transform_4(%arg0: i32) -> (i32, i32) {
    %c0_i32 = arith.constant 0 : i32
    %c0_i32_0 = arith.constant 0 : i32
    %c0_i32_1 = arith.constant 0 : i32
    return %c0_i32, %c0_i32_0 : i32, i32
  }
  func.func @transform_5(%arg0: i32) -> (i32, i32) {
    %c0_i32 = arith.constant 0 : i32
    %c0_i32_0 = arith.constant 0 : i32
    %c0_i32_1 = arith.constant 0 : i32
    return %c0_i32, %c0_i32_0 : i32, i32
  }
  func.func @transform_6(%arg0: i32) -> (i32, i32) {
    %c0_i32 = arith.constant 0 : i32
    %c0_i32_0 = arith.constant 0 : i32
    %c0_i32_1 = arith.constant 0 : i32
    return %c0_i32, %c0_i32_0 : i32, i32
  }
  func.func @transform_7(%arg0: i32) -> (i32, i32) {
    %c0_i32 = arith.constant 0 : i32
    %c0_i32_0 = arith.constant 0 : i32
    %c0_i32_1 = arith.constant 0 : i32
    return %c0_i32, %c0_i32_0 : i32, i32
  }
  func.func @transform_8(%arg0: i32) -> (i32, i32) {
    %c0_i32 = arith.constant 0 : i32
    %c0_i32_0 = arith.constant 0 : i32
    %c0_i32_1 = arith.constant 0 : i32
    return %c0_i32, %c0_i32_0 : i32, i32
  }
  func.func @transform_9(%arg0: i32) -> (i32, i32) {
    %c0_i32 = arith.constant 0 : i32
    %c0_i32_0 = arith.constant 0 : i32
    %c0_i32_1 = arith.constant 0 : i32
    return %c0_i32, %c0_i32_0 : i32, i32
  }
  func.func @transform_10(%arg0: i32) -> (i32, i32) {
    %c0_i32 = arith.constant 0 : i32
    %c0_i32_0 = arith.constant 0 : i32
    %c0_i32_1 = arith.constant 0 : i32
    return %c0_i32, %c0_i32_0 : i32, i32
  }
  func.func @transform_11(%arg0: i32) -> (i32, i32) {
    %c0_i32 = arith.constant 0 : i32
    %c0_i32_0 = arith.constant 0 : i32
    %c0_i32_1 = arith.constant 0 : i32
    return %c0_i32, %c0_i32_0 : i32, i32
  }
  func.func @transform_12(%arg0: i32) -> i32 {
    %c0_i32 = arith.constant 0 : i32
    %c0_i32_0 = arith.constant 0 : i32
    return %c0_i32 : i32
  }
  func.func @transform_13(%arg0: i32) -> (i32, i32) {
    %c0_i32 = arith.constant 0 : i32
    %c0_i32_0 = arith.constant 0 : i32
    return %c0_i32, %arg0 : i32, i32
  }
}

</mosaic_0001>

<llo_original>
// kernel: tpu_custom_call.1
$region0: #{tpu_custom_call.1}
  #allocation0 [shape = 'u32[]', space=smem, size = 0x4, offset = 0x4, fixed_abs, tag = 'smem constant byte address 0x4 - core index']
  #allocation1 [shape = 'u32[144,128]{1,0:T(1,128)}', space=vmem, size = 0x12000, scoped, tag = 'internal scratch']
  #allocation2 [shape = 'f32[1]{0:T(128)S(6)}', space=smem, size = 0x200, scoped, tag = 'scoped memory for tpu_custom_call.1']
  %s0 = inlined_call_operand.vmem [shape: f32[8,16], index: 0, kind: input, shape index: {}]
  %s1 = inlined_call_operand.vmem [shape: f32[8,4], index: 1, kind: input, shape index: {}]
  %s2 = inlined_call_operand.hbm [shape: f32[8,8], index: 2, kind: input, shape index: {}]
  %s3 = inlined_call_operand.vmem [shape: f32[16,128], index: 3, kind: input, shape index: {}]
  %s4 = inlined_call_operand.hbm [shape: f32[4,128], index: 4, kind: input, shape index: {}]
  %s5 = inlined_call_operand.vmem [shape: f32[8,128], index: 5, kind: input, shape index: {}]
  %s6 = inlined_call_operand.vmem [shape: f32[1,128], index: 6, kind: input, shape index: {}]
  %s7 = inlined_call_operand.hbm [shape: f32[128,128], index: 7, kind: input, shape index: {}]
  %s8 = inlined_call_operand.vmem [shape: f32[1,128], index: 8, kind: input, shape index: {}]
  %s9 = inlined_call_operand.hbm [shape: f32[128,128], index: 9, kind: input, shape index: {}]
  %s10 = inlined_call_operand.vmem [shape: f32[1,128], index: 10, kind: input, shape index: {}]
  %s11 = inlined_call_operand.vmem [shape: f32[1,128], index: 11, kind: input, shape index: {}]
  %s12 = inlined_call_operand.<no memory space> [shape: f32[1], index: 12, kind: input, shape index: {}]
  %s13 = inlined_call_operand.hbm [shape: f32[1,8], index: 13, kind: output, shape index: {}]
  %s14 = sld [smem:[#allocation0]]
  $region78: #{tpu_custom_call.1} parent=0
    _
  %s16 = ssub.s32 1, %s14
  %s17 = scalar_select 0, %s16, %s14
  %18 = sst [smem:[#allocation2]] %s12
  $region1: #{tpu_custom_call.1} parent=0
    #allocation3 [shape = 'u8[4096]{0}', space=vmem, size = 0x1000, scoped, tag = 'input window, operand 2, single buffered']
    #allocation4 [shape = 's32[1]{0}', space=sflag, size = 0x4, scoped, tag = 'scoped memory for tpu_custom_call.1']
    #allocation5 [shape = 's32[1]{0}', space=sflag, size = 0x4, scoped, tag = 'scoped memory for tpu_custom_call.1']
    #allocation6 [shape = 'u8[2048]{0}', space=vmem, size = 0x800, scoped, tag = 'input window, operand 4, single buffered']
    #allocation7 [shape = 's32[1]{0}', space=sflag, size = 0x4, scoped, tag = 'scoped memory for tpu_custom_call.1']
    #allocation8 [shape = 'u8[65536]{0}', space=vmem, size = 0x10000, scoped, tag = 'input window, operand 7, single buffered']
    #allocation9 [shape = 'u8[65536]{0}', space=vmem, size = 0x10000, scoped, tag = 'input window, operand 9, single buffered']
    #allocation10 [shape = 's32[1]{0}', space=sflag, size = 0x4, scoped, tag = 'scoped memory for tpu_custom_call.1']
    #allocation11 [shape = 'u8[512]{0}', space=vmem, size = 0x400, scoped, tag = 'output window, operand 0, single buffered']
    %19 = vsyncpa [#allocation4], 0
    %20 = vsyncpa [#allocation7], 0
    %21 = vsyncpa [#allocation10], 0
    %22 = vsyncpa [#allocation5], 0
    // Predicated region
    $region2: #{tpu_custom_call.1} parent=1 // pred_check
      _
    $region3: #{tpu_custom_call.1} parent=1 // pred_check_branch
      %24 = sbr.rel (0) target = $region5
    $region4: #{tpu_custom_call.1} parent=1 // pred_region
      _
    $region5: #{tpu_custom_call.1} parent=1 // pred_fallthru
      _
    // Predicated region
    $region6: #{tpu_custom_call.1} parent=1 // pred_check
      _
    $region7: #{tpu_custom_call.1} parent=1 // pred_check_branch
      %26 = sbr.rel (0) target = $region9
    $region8: #{tpu_custom_call.1} parent=1 // pred_region
      _
    $region9: #{tpu_custom_call.1} parent=1 // pred_fallthru
      _
    // Predicated region
    $region10: #{tpu_custom_call.1} parent=1 // pred_check
      _
    $region11: #{tpu_custom_call.1} parent=1 // pred_check_branch
      %28 = sbr.rel (0) target = $region13
    $region12: #{tpu_custom_call.1} parent=1 // pred_region
      %s30 = ssub.s32 128, 128
      %31 = vsyncadd [#allocation4], %s30
      %s33 = sshll.u32 [#allocation3], 4
      %s34 = int_to_ptr.vmem [resolvable:$true] %s33
      %36 = dma.hbm_to_vmem [thread:$0]  %s2, 128, %s34, [#allocation4]
    $region13: #{tpu_custom_call.1} parent=1 // pred_fallthru
      _
    // Predicated region
    $region14: #{tpu_custom_call.1} parent=1 // pred_check
      _
    $region15: #{tpu_custom_call.1} parent=1 // pred_check_branch
      %38 = sbr.rel (0) target = $region17
    $region16: #{tpu_custom_call.1} parent=1 // pred_region
      _
    $region17: #{tpu_custom_call.1} parent=1 // pred_fallthru
      _
    // Predicated region
    $region18: #{tpu_custom_call.1} parent=1 // pred_check
      _
    $region19: #{tpu_custom_call.1} parent=1 // pred_check_branch
      %40 = sbr.rel (0) target = $region21
    $region20: #{tpu_custom_call.1} parent=1 // pred_region
      %s42 = ssub.s32 64, 64
      %43 = vsyncadd [#allocation7], %s42
      %s45 = sshll.u32 [#allocation6], 4
      %s46 = int_to_ptr.vmem [resolvable:$true] %s45
      %48 = dma.hbm_to_vmem [thread:$0]  %s4, 64, %s46, [#allocation7]
    $region21: #{tpu_custom_call.1} parent=1 // pred_fallthru
      _
    // Predicated region
    $region22: #{tpu_custom_call.1} parent=1 // pred_check
      _
    $region23: #{tpu_custom_call.1} parent=1 // pred_check_branch
      %50 = sbr.rel (0) target = $region25
    $region24: #{tpu_custom_call.1} parent=1 // pred_region
      _
    $region25: #{tpu_custom_call.1} parent=1 // pred_fallthru
      _
    // Predicated region
    $region26: #{tpu_custom_call.1} parent=1 // pred_check
      _
    $region27: #{tpu_custom_call.1} parent=1 // pred_check_branch
      %52 = sbr.rel (0) target = $region29
    $region28: #{tpu_custom_call.1} parent=1 // pred_region
      _
    $region29: #{tpu_custom_call.1} parent=1 // pred_fallthru
      _
    // Predicated region
    $region30: #{tpu_custom_call.1} parent=1 // pred_check
      _
    $region31: #{tpu_custom_call.1} parent=1 // pred_check_branch
      %54 = sbr.rel (0) target = $region33
    $region32: #{tpu_custom_call.1} parent=1 // pred_region
      %s56 = ssub.s32 2048, 2048
      %57 = vsyncadd [#allocation7], %s56
      %s58 = sshll.u32 [#allocation8], 4
      %s59 = int_to_ptr.vmem [resolvable:$true] %s58
      %64 = dma.hbm_to_vmem [thread:$0]  %s7, 2048, %s59, [#allocation7], 128, 128, 8
    $region33: #{tpu_custom_call.1} parent=1 // pred_fallthru
      _
    // Predicated region
    $region34: #{tpu_custom_call.1} parent=1 // pred_check
      _
    $region35: #{tpu_custom_call.1} parent=1 // pred_check_branch
      %66 = sbr.rel (0) target = $region37
    $region36: #{tpu_custom_call.1} parent=1 // pred_region
      _
    $region37: #{tpu_custom_call.1} parent=1 // pred_fallthru
      _
    // Predicated region
    $region38: #{tpu_custom_call.1} parent=1 // pred_check
      _
    $region39: #{tpu_custom_call.1} parent=1 // pred_check_branch
      %68 = sbr.rel (0) target = $region41
    $region40: #{tpu_custom_call.1} parent=1 // pred_region
      %s70 = ssub.s32 2048, 2048
      %71 = vsyncadd [#allocation10], %s70
      %s72 = sshll.u32 [#allocation9], 4
      %s73 = int_to_ptr.vmem [resolvable:$true] %s72
      %78 = dma.hbm_to_vmem [thread:$0]  %s9, 2048, %s73, [#allocation10], 128, 128, 8
    $region41: #{tpu_custom_call.1} parent=1 // pred_fallthru
      _
    // Predicated region
    $region42: #{tpu_custom_call.1} parent=1 // pred_check
      _
    $region43: #{tpu_custom_call.1} parent=1 // pred_check_branch
      %80 = sbr.rel (0) target = $region45
    $region44: #{tpu_custom_call.1} parent=1 // pred_region
      _
    $region45: #{tpu_custom_call.1} parent=1 // pred_fallthru
      _
    // Predicated region
    $region46: #{tpu_custom_call.1} parent=1 // pred_check
      _
    $region47: #{tpu_custom_call.1} parent=1 // pred_check_branch
      %82 = sbr.rel (0) target = $region49
    $region48: #{tpu_custom_call.1} parent=1 // pred_region
      _
    $region49: #{tpu_custom_call.1} parent=1 // pred_fallthru
      _
    // Predicated region
    $region50: #{tpu_custom_call.1} parent=1 // pred_check
      _
    $region51: #{tpu_custom_call.1} parent=1 // pred_check_branch
      %84 = sbr.rel (0) target = $region53
    $region52: #{tpu_custom_call.1} parent=1 // pred_region
      _
    $region53: #{tpu_custom_call.1} parent=1 // pred_fallthru
      _
    // Predicated region
    $region54: #{tpu_custom_call.1} parent=1 // pred_check
      _
    $region55: #{tpu_custom_call.1} parent=1 // pred_check_branch
      %86 = sbr.rel (0) target = $region57
    $region56: #{tpu_custom_call.1} parent=1 // pred_region
      %87 = dma.done [#allocation4], 128
    $region57: #{tpu_custom_call.1} parent=1 // pred_fallthru
      _
    // Predicated region
    $region58: #{tpu_custom_call.1} parent=1 // pred_check
      _
    $region59: #{tpu_custom_call.1} parent=1 // pred_check_branch
      %89 = sbr.rel (0) target = $region61
    $region60: #{tpu_custom_call.1} parent=1 // pred_region
      %90 = dma.done [#allocation7], 64
    $region61: #{tpu_custom_call.1} parent=1 // pred_fallthru
      _
    // Predicated region
    $region62: #{tpu_custom_call.1} parent=1 // pred_check
      _
    $region63: #{tpu_custom_call.1} parent=1 // pred_check_branch
      %92 = sbr.rel (0) target = $region65
    $region64: #{tpu_custom_call.1} parent=1 // pred_region
      %93 = dma.done [#allocation7], 2048
    $region65: #{tpu_custom_call.1} parent=1 // pred_fallthru
      _
    // Predicated region
    $region66: #{tpu_custom_call.1} parent=1 // pred_check
      _
    $region67: #{tpu_custom_call.1} parent=1 // pred_check_branch
      %95 = sbr.rel (0) target = $region69
    $region68: #{tpu_custom_call.1} parent=1 // pred_region
      %96 = dma.done [#allocation10], 2048
    $region69: #{tpu_custom_call.1} parent=1 // pred_fallthru
      _
    %v97 = vld [vmem:[%s0] sm:$0xff]
    %v98 = vld [vmem:[%s3] sm:$0xff]
    %v99 = vld [vmem:[%s3 + $0x8] sm:$0xff]
    %v100 = vld [vmem:[%s1] sm:$0xff]
    %v101 = vld [vmem:[#allocation6] sm:$0xf]
    %vm102 = vcmask 31744
    %v104 = vsel %vm102, %v100, 0
    %vm106 = vcmask 1043456
    %v108 = vsel %vm106, %v101, 0
    %110 = vmatprep.subr.mxu0 0.0
    %111 = vmatpush1.msra.mxu0 %v108
    %112 = vmatprep.subr.mxu0 0.0
    %113 = vmatpush1.msra.mxu0 0.0
    %114 = vmatprep.subr.mxu0 0.0
    %115 = vmatpush1.msra.mxu0 0.0
    %116 = vmatprep.subr.mxu0 0.0
    %117 = vmatpush1.msra.mxu0 0.0
    %118 = vmatprep.subr.mxu0 0.0
    %119 = vmatpush1.msra.mxu0 0.0
    %120 = vmatprep.subr.mxu0 0.0
    %121 = vmatpush1.msra.mxu0 0.0
    %122 = vmatprep.subr.mxu0 0.0
    %123 = vmatpush1.msra.mxu0 0.0
    %124 = vmatprep.subr.mxu0 0.0
    %125 = vmatpush1.msra.mxu0 0.0
    %126 = vmatprep.subr.mxu0 0.0
    %127 = vmatpush1.msra.mxu0 0.0
    %128 = vmatprep.subr.mxu0 0.0
    %129 = vmatpush1.msra.mxu0 0.0
    %130 = vmatprep.subr.mxu0 0.0
    %131 = vmatpush1.msra.mxu0 0.0
    %132 = vmatprep.subr.mxu0 0.0
    %133 = vmatpush1.msra.mxu0 0.0
    %134 = vmatprep.subr.mxu0 0.0
    %135 = vmatpush1.msra.mxu0 0.0
    %136 = vmatprep.subr.mxu0 0.0
    %137 = vmatpush1.msra.mxu0 0.0
    %138 = vmatprep.subr.mxu0 0.0
    %139 = vmatpush1.msra.mxu0 0.0
    %140 = vmatprep.subr.mxu0 0.0
    %141 = vmatpush1.msra.mxu0 0.0
    %142 = vmatprep.subr.mxu0 0.0
    %143 = vmatpush1.msra.mxu0 0.0
    %144 = vmatprep.subr.mxu0 0.0
    %145 = vmatpush1.msra.mxu0 0.0
    %146 = vmatprep.subr.mxu0 0.0
    %147 = vmatpush1.msra.mxu0 0.0
    %148 = vmatprep.subr.mxu0 0.0
    %149 = vmatpush1.msra.mxu0 0.0
    %150 = vmatprep.subr.mxu0 0.0
    %151 = vmatpush1.msra.mxu0 0.0
    %152 = vmatprep.subr.mxu0 0.0
    %153 = vmatpush1.msra.mxu0 0.0
    %154 = vmatprep.subr.mxu0 0.0
    %155 = vmatpush1.msra.mxu0 0.0
    %156 = vmatprep.subr.mxu0 0.0
    %157 = vmatpush1.msra.mxu0 0.0
    %158 = vmatprep.subr.mxu0 0.0
    %159 = vmatpush1.msra.mxu0 0.0
    %160 = vmatprep.subr.mxu0 0.0
    %161 = vmatpush1.msra.mxu0 0.0
    %162 = vmatprep.subr.mxu0 0.0
    %163 = vmatpush1.msra.mxu0 0.0
    %164 = vmatprep.subr.mxu0 0.0
    %165 = vmatpush1.msra.mxu0 0.0
    %166 = vmatprep.subr.mxu0 0.0
    %167 = vmatpush1.msra.mxu0 0.0
    %168 = vmatprep.subr.mxu0 0.0
    %169 = vmatpush1.msra.mxu0 0.0
    %170 = vmatprep.subr.mxu0 0.0
    %171 = vmatpush1.msra.mxu0 0.0
    %172 = vmatprep.subr.mxu0 0.0
    %173 = vmatpush1.msra.mxu0 0.0
    %174 = vmatprep.mubr.f32.mxu0 0.0
    %175 = vmatmul.mubr.f32.gmra.mrb[0].mxu0 %v104
    %v176 = vpop.f32.mrb[0].mxu0
    %v177 = vadd.f32 0.0, %v176
    %v178 = vpop.f32.mrb[0].mxu0
    %179 = vdwg.mxu0
    %vm180 = vcmask 130048
    %v182 = vsel %vm180, %v97, 0
    %184 = vmatprep.subr.mxu0 0.0
    %185 = vmatpush1.msra.mxu0 %v98
    %186 = vmatprep.subr.mxu0 0.0
    %187 = vmatpush1.msra.mxu0 %v99
    %188 = vmatprep.subr.mxu0 0.0
    %189 = vmatpush1.msra.mxu0 0.0
    %190 = vmatprep.subr.mxu0 0.0
    %191 = vmatpush1.msra.mxu0 0.0
    %192 = vmatprep.subr.mxu0 0.0
    %193 = vmatpush1.msra.mxu0 0.0
    %194 = vmatprep.subr.mxu0 0.0
    %195 = vmatpush1.msra.mxu0 0.0
    %196 = vmatprep.subr.mxu0 0.0
    %197 = vmatpush1.msra.mxu0 0.0
    %198 = vmatprep.subr.mxu0 0.0
    %199 = vmatpush1.msra.mxu0 0.0
    %200 = vmatprep.subr.mxu0 0.0
    %201 = vmatpush1.msra.mxu0 0.0
    %202 = vmatprep.subr.mxu0 0.0
    %203 = vmatpush1.msra.mxu0 0.0
    %204 = vmatprep.subr.mxu0 0.0
    %205 = vmatpush1.msra.mxu0 0.0
    %206 = vmatprep.subr.mxu0 0.0
    %207 = vmatpush1.msra.mxu0 0.0
    %208 = vmatprep.subr.mxu0 0.0
    %209 = vmatpush1.msra.mxu0 0.0
    %210 = vmatprep.subr.mxu0 0.0
    %211 = vmatpush1.msra.mxu0 0.0
    %212 = vmatprep.subr.mxu0 0.0
    %213 = vmatpush1.msra.mxu0 0.0
    %214 = vmatprep.subr.mxu0 0.0
    %215 = vmatpush1.msra.mxu0 0.0
    %216 = vmatprep.subr.mxu0 0.0
    %217 = vmatpush1.msra.mxu0 0.0
    %218 = vmatprep.subr.mxu0 0.0
    %219 = vmatpush1.msra.mxu0 0.0
    %220 = vmatprep.subr.mxu0 0.0
    %221 = vmatpush1.msra.mxu0 0.0
    %222 = vmatprep.subr.mxu0 0.0
    %223 = vmatpush1.msra.mxu0 0.0
    %224 = vmatprep.subr.mxu0 0.0
    %225 = vmatpush1.msra.mxu0 0.0
    %226 = vmatprep.subr.mxu0 0.0
    %227 = vmatpush1.msra.mxu0 0.0
    %228 = vmatprep.subr.mxu0 0.0
    %229 = vmatpush1.msra.mxu0 0.0
    %230 = vmatprep.subr.mxu0 0.0
    %231 = vmatpush1.msra.mxu0 0.0
    %232 = vmatprep.subr.mxu0 0.0
    %233 = vmatpush1.msra.mxu0 0.0
    %234 = vmatprep.subr.mxu0 0.0
    %235 = vmatpush1.msra.mxu0 0.0
    %236 = vmatprep.subr.mxu0 0.0
    %237 = vmatpush1.msra.mxu0 0.0
    %238 = vmatprep.subr.mxu0 0.0
    %239 = vmatpush1.msra.mxu0 0.0
    %240 = vmatprep.subr.mxu0 0.0
    %241 = vmatpush1.msra.mxu0 0.0
    %242 = vmatprep.subr.mxu0 0.0
    %243 = vmatpush1.msra.mxu0 0.0
    %244 = vmatprep.subr.mxu0 0.0
    %245 = vmatpush1.msra.mxu0 0.0
    %246 = vmatprep.subr.mxu0 0.0
    %247 = vmatpush1.msra.mxu0 0.0
    %248 = vmatprep.mubr.f32.mxu0 0.0
    %249 = vmatmul.mubr.f32.gmra.mrb[0].mxu0 %v182
    %v250 = vpop.f32.mrb[0].mxu0
    %v251 = vadd.f32 %v177, %v250
    %v252 = vpop.f32.mrb[0].mxu0
    %253 = vdwg.mxu0
    %v254 = vld [vmem:[#allocation3] sm:$0xff]
    %v255 = vld [vmem:[%s5] sm:$0xff]
    %vm256 = vcmask 64512
    %v258 = vsel %vm256, %v254, 0
    %260 = vmatprep.subr.mxu0 0.0
    %261 = vmatpush1.msra.mxu0 %v255
    %262 = vmatprep.subr.mxu0 0.0
    %263 = vmatpush1.msra.mxu0 0.0
    %264 = vmatprep.subr.mxu0 0.0
    %265 = vmatpush1.msra.mxu0 0.0
    %266 = vmatprep.subr.mxu0 0.0
    %267 = vmatpush1.msra.mxu0 0.0
    %268 = vmatprep.subr.mxu0 0.0
    %269 = vmatpush1.msra.mxu0 0.0
    %270 = vmatprep.subr.mxu0 0.0
    %271 = vmatpush1.msra.mxu0 0.0
    %272 = vmatprep.subr.mxu0 0.0
    %273 = vmatpush1.msra.mxu0 0.0
    %274 = vmatprep.subr.mxu0 0.0
    %275 = vmatpush1.msra.mxu0 0.0
    %276 = vmatprep.subr.mxu0 0.0
    %277 = vmatpush1.msra.mxu0 0.0
    %278 = vmatprep.subr.mxu0 0.0
    %279 = vmatpush1.msra.mxu0 0.0
    %280 = vmatprep.subr.mxu0 0.0
    %281 = vmatpush1.msra.mxu0 0.0
    %282 = vmatprep.subr.mxu0 0.0
    %283 = vmatpush1.msra.mxu0 0.0
    %284 = vmatprep.subr.mxu0 0.0
    %285 = vmatpush1.msra.mxu0 0.0
    %286 = vmatprep.subr.mxu0 0.0
    %287 = vmatpush1.msra.mxu0 0.0
    %288 = vmatprep.subr.mxu0 0.0
    %289 = vmatpush1.msra.mxu0 0.0
    %290 = vmatprep.subr.mxu0 0.0
    %291 = vmatpush1.msra.mxu0 0.0
    %292 = vmatprep.subr.mxu0 0.0
    %293 = vmatpush1.msra.mxu0 0.0
    %294 = vmatprep.subr.mxu0 0.0
    %295 = vmatpush1.msra.mxu0 0.0
    %296 = vmatprep.subr.mxu0 0.0
    %297 = vmatpush1.msra.mxu0 0.0
    %298 = vmatprep.subr.mxu0 0.0
    %299 = vmatpush1.msra.mxu0 0.0
    %300 = vmatprep.subr.mxu0 0.0
    %301 = vmatpush1.msra.mxu0 0.0
    %302 = vmatprep.subr.mxu0 0.0
    %303 = vmatpush1.msra.mxu0 0.0
    %304 = vmatprep.subr.mxu0 0.0
    %305 = vmatpush1.msra.mxu0 0.0
    %306 = vmatprep.subr.mxu0 0.0
    %307 = vmatpush1.msra.mxu0 0.0
    %308 = vmatprep.subr.mxu0 0.0
    %309 = vmatpush1.msra.mxu0 0.0
    %310 = vmatprep.subr.mxu0 0.0
    %311 = vmatpush1.msra.mxu0 0.0
    %312 = vmatprep.subr.mxu0 0.0
    %313 = vmatpush1.msra.mxu0 0.0
    %314 = vmatprep.subr.mxu0 0.0
    %315 = vmatpush1.msra.mxu0 0.0
    %316 = vmatprep.subr.mxu0 0.0
    %317 = vmatpush1.msra.mxu0 0.0
    %318 = vmatprep.subr.mxu0 0.0
    %319 = vmatpush1.msra.mxu0 0.0
    %320 = vmatprep.subr.mxu0 0.0
    %321 = vmatpush1.msra.mxu0 0.0
    %322 = vmatprep.subr.mxu0 0.0
    %323 = vmatpush1.msra.mxu0 0.0
    %324 = vmatprep.mubr.f32.mxu0 0.0
    %325 = vmatmul.mubr.f32.gmra.mrb[0].mxu0 %v258
    %v326 = vpop.f32.mrb[0].mxu0
    %v327 = vadd.f32 0.0, %v326
    %v328 = vpop.f32.mrb[0].mxu0
    %329 = vdwg.mxu0
    %v330 = vadd.f32 %v251, %v327
    %v331 = vld [vmem:[%s6] sm:$0x1]
    %v333 = vlaneseq
    %v334 = vshrl.u32 %v333, 7
    %v335 = vsub.s32 0, %v334
    %v336 = vrot.slane %v331, %v335
    %v338 = vadd.f32 %v330, %v336
    %v339 = vmax.f32 %v338, 0.0
    %v340 = vld [vmem:[#allocation8] sm:$0xff]
    %v341 = vld [vmem:[#allocation8 + $0x8] sm:$0xff]
    %v342 = vld [vmem:[#allocation8 + $0x10] sm:$0xff]
    %v343 = vld [vmem:[#allocation8 + $0x18] sm:$0xff]
    %v344 = vld [vmem:[#allocation8 + $0x20] sm:$0xff]
    %v345 = vld [vmem:[#allocation8 + $0x28] sm:$0xff]
    %v346 = vld [vmem:[#allocation8 + $0x30] sm:$0xff]
    %v347 = vld [vmem:[#allocation8 + $0x38] sm:$0xff]
    %v348 = vld [vmem:[#allocation8 + $0x40] sm:$0xff]
    %v349 = vld [vmem:[#allocation8 + $0x48] sm:$0xff]
    %v350 = vld [vmem:[#allocation8 + $0x50] sm:$0xff]
    %v351 = vld [vmem:[#allocation8 + $0x58] sm:$0xff]
    %v352 = vld [vmem:[#allocation8 + $0x60] sm:$0xff]
    %v353 = vld [vmem:[#allocation8 + $0x68] sm:$0xff]
    %v354 = vld [vmem:[#allocation8 + $0x70] sm:$0xff]
    %v355 = vld [vmem:[#allocation8 + $0x78] sm:$0xff]
    %v356 = vld [vmem:[%s8] sm:$0x1]
    %v358 = vlaneseq
    %v359 = vshrl.u32 %v358, 7
    %v360 = vsub.s32 0, %v359
    %v361 = vrot.slane %v356, %v360
    %363 = vmatprep.subr.mxu0 0.0
    %364 = vmatpush1.msra.mxu0 %v340
    %365 = vmatprep.subr.mxu0 0.0
    %366 = vmatpush1.msra.mxu0 %v341
    %367 = vmatprep.subr.mxu0 0.0
    %368 = vmatpush1.msra.mxu0 %v342
    %369 = vmatprep.subr.mxu0 0.0
    %370 = vmatpush1.msra.mxu0 %v343
    %371 = vmatprep.subr.mxu0 0.0
    %372 = vmatpush1.msra.mxu0 %v344
    %373 = vmatprep.subr.mxu0 0.0
    %374 = vmatpush1.msra.mxu0 %v345
    %375 = vmatprep.subr.mxu0 0.0
    %376 = vmatpush1.msra.mxu0 %v346
    %377 = vmatprep.subr.mxu0 0.0
    %378 = vmatpush1.msra.mxu0 %v347
    %379 = vmatprep.subr.mxu0 0.0
    %380 = vmatpush1.msra.mxu0 %v348
    %381 = vmatprep.subr.mxu0 0.0
    %382 = vmatpush1.msra.mxu0 %v349
    %383 = vmatprep.subr.mxu0 0.0
    %384 = vmatpush1.msra.mxu0 %v350
    %385 = vmatprep.subr.mxu0 0.0
    %386 = vmatpush1.msra.mxu0 %v351
    %387 = vmatprep.subr.mxu0 0.0
    %388 = vmatpush1.msra.mxu0 %v352
    %389 = vmatprep.subr.mxu0 0.0
    %390 = vmatpush1.msra.mxu0 %v353
    %391 = vmatprep.subr.mxu0 0.0
    %392 = vmatpush1.msra.mxu0 %v354
    %393 = vmatprep.subr.mxu0 0.0
    %394 = vmatpush1.msra.mxu0 %v355
    %395 = vmatprep.subr.mxu0 0.0
    %396 = vmatpush1.msra.mxu0 0.0
    %397 = vmatprep.subr.mxu0 0.0
    %398 = vmatpush1.msra.mxu0 0.0
    %399 = vmatprep.subr.mxu0 0.0
    %400 = vmatpush1.msra.mxu0 0.0
    %401 = vmatprep.subr.mxu0 0.0
    %402 = vmatpush1.msra.mxu0 0.0
    %403 = vmatprep.subr.mxu0 0.0
    %404 = vmatpush1.msra.mxu0 0.0
    %405 = vmatprep.subr.mxu0 0.0
    %406 = vmatpush1.msra.mxu0 0.0
    %407 = vmatprep.subr.mxu0 0.0
    %408 = vmatpush1.msra.mxu0 0.0
    %409 = vmatprep.subr.mxu0 0.0
    %410 = vmatpush1.msra.mxu0 0.0
    %411 = vmatprep.subr.mxu0 0.0
    %412 = vmatpush1.msra.mxu0 0.0
    %413 = vmatprep.subr.mxu0 0.0
    %414 = vmatpush1.msra.mxu0 0.0
    %415 = vmatprep.subr.mxu0 0.0
    %416 = vmatpush1.msra.mxu0 0.0
    %417 = vmatprep.subr.mxu0 0.0
    %418 = vmatpush1.msra.mxu0 0.0
    %419 = vmatprep.subr.mxu0 0.0
    %420 = vmatpush1.msra.mxu0 0.0
    %421 = vmatprep.subr.mxu0 0.0
    %422 = vmatpush1.msra.mxu0 0.0
    %423 = vmatprep.subr.mxu0 0.0
    %424 = vmatpush1.msra.mxu0 0.0
    %425 = vmatprep.subr.mxu0 0.0
    %426 = vmatpush1.msra.mxu0 0.0
    %427 = vmatprep.mubr.f32.mxu0 0.0
    %428 = vmatmul.mubr.f32.gmra.mrb[0].mxu0 %v339
    %v429 = vpop.f32.mrb[0].mxu0
    %v430 = vadd.f32 %v361, %v429
    %v431 = vpop.f32.mrb[0].mxu0
    %432 = vdwg.mxu0
    %v433 = vmax.f32 %v430, 0.0
    %v434 = vld [vmem:[#allocation9] sm:$0xff]
    %v435 = vld [vmem:[#allocation9 + $0x8] sm:$0xff]
    %v436 = vld [vmem:[#allocation9 + $0x10] sm:$0xff]
    %v437 = vld [vmem:[#allocation9 + $0x18] sm:$0xff]
    %v438 = vld [vmem:[#allocation9 + $0x20] sm:$0xff]
    %v439 = vld [vmem:[#allocation9 + $0x28] sm:$0xff]
    %v440 = vld [vmem:[#allocation9 + $0x30] sm:$0xff]
    %v441 = vld [vmem:[#allocation9 + $0x38] sm:$0xff]
    %v442 = vld [vmem:[#allocation9 + $0x40] sm:$0xff]
    %v443 = vld [vmem:[#allocation9 + $0x48] sm:$0xff]
    %v444 = vld [vmem:[#allocation9 + $0x50] sm:$0xff]
    %v445 = vld [vmem:[#allocation9 + $0x58] sm:$0xff]
    %v446 = vld [vmem:[#allocation9 + $0x60] sm:$0xff]
    %v447 = vld [vmem:[#allocation9 + $0x68] sm:$0xff]
    %v448 = vld [vmem:[#allocation9 + $0x70] sm:$0xff]
    %v449 = vld [vmem:[#allocation9 + $0x78] sm:$0xff]
    %v450 = vld [vmem:[%s10] sm:$0x1]
    %v452 = vlaneseq
    %v453 = vshrl.u32 %v452, 7
    %v454 = vsub.s32 0, %v453
    %v455 = vrot.slane %v450, %v454
    %457 = vmatprep.subr.mxu0 0.0
    %458 = vmatpush1.msra.mxu0 %v434
    %459 = vmatprep.subr.mxu0 0.0
    %460 = vmatpush1.msra.mxu0 %v435
    %461 = vmatprep.subr.mxu0 0.0
    %462 = vmatpush1.msra.mxu0 %v436
    %463 = vmatprep.subr.mxu0 0.0
    %464 = vmatpush1.msra.mxu0 %v437
    %465 = vmatprep.subr.mxu0 0.0
    %466 = vmatpush1.msra.mxu0 %v438
    %467 = vmatprep.subr.mxu0 0.0
    %468 = vmatpush1.msra.mxu0 %v439
    %469 = vmatprep.subr.mxu0 0.0
    %470 = vmatpush1.msra.mxu0 %v440
    %471 = vmatprep.subr.mxu0 0.0
    %472 = vmatpush1.msra.mxu0 %v441
    %473 = vmatprep.subr.mxu0 0.0
    %474 = vmatpush1.msra.mxu0 %v442
    %475 = vmatprep.subr.mxu0 0.0
    %476 = vmatpush1.msra.mxu0 %v443
    %477 = vmatprep.subr.mxu0 0.0
    %478 = vmatpush1.msra.mxu0 %v444
    %479 = vmatprep.subr.mxu0 0.0
    %480 = vmatpush1.msra.mxu0 %v445
    %481 = vmatprep.subr.mxu0 0.0
    %482 = vmatpush1.msra.mxu0 %v446
    %483 = vmatprep.subr.mxu0 0.0
    %484 = vmatpush1.msra.mxu0 %v447
    %485 = vmatprep.subr.mxu0 0.0
    %486 = vmatpush1.msra.mxu0 %v448
    %487 = vmatprep.subr.mxu0 0.0
    %488 = vmatpush1.msra.mxu0 %v449
    %489 = vmatprep.subr.mxu0 0.0
    %490 = vmatpush1.msra.mxu0 0.0
    %491 = vmatprep.subr.mxu0 0.0
    %492 = vmatpush1.msra.mxu0 0.0
    %493 = vmatprep.subr.mxu0 0.0
    %494 = vmatpush1.msra.mxu0 0.0
    %495 = vmatprep.subr.mxu0 0.0
    %496 = vmatpush1.msra.mxu0 0.0
    %497 = vmatprep.subr.mxu0 0.0
    %498 = vmatpush1.msra.mxu0 0.0
    %499 = vmatprep.subr.mxu0 0.0
    %500 = vmatpush1.msra.mxu0 0.0
    %501 = vmatprep.subr.mxu0 0.0
    %502 = vmatpush1.msra.mxu0 0.0
    %503 = vmatprep.subr.mxu0 0.0
    %504 = vmatpush1.msra.mxu0 0.0
    %505 = vmatprep.subr.mxu0 0.0
    %506 = vmatpush1.msra.mxu0 0.0
    %507 = vmatprep.subr.mxu0 0.0
    %508 = vmatpush1.msra.mxu0 0.0
    %509 = vmatprep.subr.mxu0 0.0
    %510 = vmatpush1.msra.mxu0 0.0
    %511 = vmatprep.subr.mxu0 0.0
    %512 = vmatpush1.msra.mxu0 0.0
    %513 = vmatprep.subr.mxu0 0.0
    %514 = vmatpush1.msra.mxu0 0.0
    %515 = vmatprep.subr.mxu0 0.0
    %516 = vmatpush1.msra.mxu0 0.0
    %517 = vmatprep.subr.mxu0 0.0
    %518 = vmatpush1.msra.mxu0 0.0
    %519 = vmatprep.subr.mxu0 0.0
    %520 = vmatpush1.msra.mxu0 0.0
    %521 = vmatprep.mubr.f32.mxu0 0.0
    %522 = vmatmul.mubr.f32.gmra.mrb[0].mxu0 %v433
    %v523 = vpop.f32.mrb[0].mxu0
    %v524 = vadd.f32 %v455, %v523
    %v525 = vpop.f32.mrb[0].mxu0
    %526 = vdwg.mxu0
    %v527 = vmax.f32 %v524, 0.0
    %v528 = vld [vmem:[%s11] sm:$0x1]
    %s529 = sld [smem:[#allocation2]]
    %v530 = vstv %s529
    %531 = vmatprep.subr.mxu0 0.0
    %532 = vmatpush1.xpose.msra.mxu0 %v527
    %533 = vmatprep.subr.mxu0 0.0
    %534 = vmatpush1.xpose.msra.mxu0 0.0
    %535 = vmatprep.subr.mxu0 0.0
    %536 = vmatpush1.xpose.msra.mxu0 0.0
    %537 = vmatprep.subr.mxu0 0.0
    %538 = vmatpush1.xpose.msra.mxu0 0.0
    %539 = vmatprep.subr.mxu0 0.0
    %540 = vmatpush1.xpose.msra.mxu0 0.0
    %541 = vmatprep.subr.mxu0 0.0
    %542 = vmatpush1.xpose.msra.mxu0 0.0
    %543 = vmatprep.subr.mxu0 0.0
    %544 = vmatpush1.xpose.msra.mxu0 0.0
    %545 = vmatprep.subr.mxu0 0.0
    %546 = vmatpush1.xpose.msra.mxu0 0.0
    %547 = vmatprep.subr.mxu0 0.0
    %548 = vmatpush1.xpose.msra.mxu0 0.0
    %549 = vmatprep.subr.mxu0 0.0
    %550 = vmatpush1.xpose.msra.mxu0 0.0
    %551 = vmatprep.subr.mxu0 0.0
    %552 = vmatpush1.xpose.msra.mxu0 0.0
    %553 = vmatprep.subr.mxu0 0.0
    %554 = vmatpush1.xpose.msra.mxu0 0.0
    %555 = vmatprep.subr.mxu0 0.0
    %556 = vmatpush1.xpose.msra.mxu0 0.0
    %557 = vmatprep.subr.mxu0 0.0
    %558 = vmatpush1.xpose.msra.mxu0 0.0
    %559 = vmatprep.subr.mxu0 0.0
    %560 = vmatpush1.xpose.msra.mxu0 0.0
    %561 = vmatprep.subr.mxu0 0.0
    %562 = vmatpush1.xpose.msra.mxu0 0.0
    %563 = vmatprep.subr.mxu0 0.0
    %564 = vmatpush1.xpose.msra.mxu0 0.0
    %565 = vmatprep.subr.mxu0 0.0
    %566 = vmatpush1.xpose.msra.mxu0 0.0
    %567 = vmatprep.subr.mxu0 0.0
    %568 = vmatpush1.xpose.msra.mxu0 0.0
    %569 = vmatprep.subr.mxu0 0.0
    %570 = vmatpush1.xpose.msra.mxu0 0.0
    %571 = vmatprep.subr.mxu0 0.0
    %572 = vmatpush1.xpose.msra.mxu0 0.0
    %573 = vmatprep.subr.mxu0 0.0
    %574 = vmatpush1.xpose.msra.mxu0 0.0
    %575 = vmatprep.subr.mxu0 0.0
    %576 = vmatpush1.xpose.msra.mxu0 0.0
    %577 = vmatprep.subr.mxu0 0.0
    %578 = vmatpush1.xpose.msra.mxu0 0.0
    %579 = vmatprep.subr.mxu0 0.0
    %580 = vmatpush1.xpose.msra.mxu0 0.0
    %581 = vmatprep.subr.mxu0 0.0
    %582 = vmatpush1.xpose.msra.mxu0 0.0
    %583 = vmatprep.subr.mxu0 0.0
    %584 = vmatpush1.xpose.msra.mxu0 0.0
    %585 = vmatprep.subr.mxu0 0.0
    %586 = vmatpush1.xpose.msra.mxu0 0.0
    %587 = vmatprep.subr.mxu0 0.0
    %588 = vmatpush1.xpose.msra.mxu0 0.0
    %589 = vmatprep.subr.mxu0 0.0
    %590 = vmatpush1.xpose.msra.mxu0 0.0
    %591 = vmatprep.subr.mxu0 0.0
    %592 = vmatpush1.xpose.msra.mxu0 0.0
    %593 = vmatprep.subr.mxu0 0.0
    %594 = vmatpush1.xpose.msra.mxu0 0.0
    %595 = vmatprep.mubr.f32.mxu0 0.0
    %596 = vmatmul.mubr.f32.gmra.mrb[0].mxu0 %v528
    %v597 = vpop.f32.mrb[0].mxu0
    %v598 = vadd.f32 %v530, %v597
    %v599 = vpop.f32.mrb[0].mxu0
    %600 = vdwg.mxu0
    %vm601 = vcmask 57344
    %602 = vst.msk [vmem:[#allocation11] sm:$0x1] %vm601, %v598
    // Predicated region
    $region70: #{tpu_custom_call.1} parent=1 // pred_check
      _
    $region71: #{tpu_custom_call.1} parent=1 // pred_check_branch
      %604 = sbr.rel (0) target = $region73
    $region72: #{tpu_custom_call.1} parent=1 // pred_region
      %s606 = ssub.s32 16, 16
      %607 = vsyncadd [#allocation5], %s606
      %s609 = sshll.u32 [#allocation11], 4
      %s610 = int_to_ptr.vmem [resolvable:$true] %s609
      %612 = dma.vmem_to_hbm [thread:$0]  %s610, 16, %s13, [#allocation5]
    $region73: #{tpu_custom_call.1} parent=1 // pred_fallthru
      _
    // Predicated region
    $region74: #{tpu_custom_call.1} parent=1 // pred_check
      _
    $region75: #{tpu_custom_call.1} parent=1 // pred_check_branch
      %614 = sbr.rel (0) target = $region77
    $region76: #{tpu_custom_call.1} parent=1 // pred_region
      %615 = dma.done [#allocation5], 16
    $region77: #{tpu_custom_call.1} parent=1 // pred_fallthru
      _
    %616 = vsyncpa [#allocation4], 1
    %617 = vsyncpa [#allocation7], 1
    %618 = vsyncpa [#allocation10], 1
    %619 = vsyncpa [#allocation5], 1

</llo_original>
